<compile_context>
chip_gen: v7x
topology: tpu7x:2x2x1
jax: 0.10.0
libtpu: 0.0.40
codegen_flags: <defaults>
</compile_context>

<pallas_src>
import jax
import jax.numpy as jnp
from jax.experimental import pallas as pl
from jax.experimental.pallas import tpu as pltpu

LANE = 128


def _round_up(x, m):
    return ((x + m - 1) // m) * m


def policy_network_kernel(a_ref, x_ref, w1_ref, b1_ref, w2_ref, b2_ref, o_ref):
    # fc1: [TB, I] @ [I, Hp] + [1, Hp]
    h = jnp.dot(x_ref[...], w1_ref[...], preferred_element_type=jnp.float32)
    h = h + b1_ref[...]
    # PReLU (single scalar parameter, PyTorch default): max(h,0) + a*min(h,0)
    a = a_ref[0]
    h = jnp.maximum(h, 0.0) + a * jnp.minimum(h, 0.0)
    # fc2: [TB, Hp] @ [Hp, Op] + [1, Op]
    y = jnp.dot(h, w2_ref[...], preferred_element_type=jnp.float32)
    y = y + b2_ref[...]
    o_ref[...] = y.astype(o_ref.dtype)


def prepare_params(params):
    """One-time prep (outside the per-call hot path):
    transpose torch-layout weights to [in, out] and zero-pad H/O to 128 lanes."""
    H, I = params["w1"].shape          # torch layout [hidden, input]
    O = params["w2"].shape[0]          # torch layout [output, hidden]
    Hp = _round_up(H, LANE)
    Op = _round_up(O, LANE)

    w1_t = jnp.zeros((I, Hp), jnp.float32).at[:, :H].set(params["w1"].T)
    b1 = jnp.zeros((1, Hp), jnp.float32).at[:, :H].set(params["b1"])
    w2_t = jnp.zeros((Hp, Op), jnp.float32).at[:H, :O].set(params["w2"].T)
    b2 = jnp.zeros((1, Op), jnp.float32).at[:, :O].set(params["b2"])
    a = params["a"].reshape(1).astype(jnp.float32)
    return {"a": a, "w1_t": w1_t, "b1": b1, "w2_t": w2_t, "b2": b2,
            "I": I, "H": H, "O": O, "Hp": Hp, "Op": Op}


def policy_network_forward(features, prepped, *, tb_max=256):
    """features: [B, input_size] f32.  prepped: output of prepare_params()."""
    B, I = features.shape
    assert I == prepped["I"]
    Hp, Op, O = prepped["Hp"], prepped["Op"], prepped["O"]

    # Batch tile: pipeline x/out over the batch; weights stay VMEM-resident.
    TB = min(tb_max, _round_up(B, 8))
    Bp = _round_up(B, TB)
    x = features.astype(jnp.float32)
    if Bp != B:
        x = jnp.zeros((Bp, I), jnp.float32).at[:B].set(x)

    out = pl.pallas_call(
        policy_network_kernel,
        out_shape=jax.ShapeDtypeStruct((Bp, Op), jnp.float32),
        grid=(Bp // TB,),
        in_specs=[
            pl.BlockSpec(memory_space=pltpu.MemorySpace.SMEM),   # a (scalar slope)
            pl.BlockSpec((TB, I), lambda i: (i, 0)),             # x tile (pipelined)
            pl.BlockSpec((I, Hp), lambda i: (0, 0)),             # w1^T (resident)
            pl.BlockSpec((1, Hp), lambda i: (0, 0)),             # b1   (resident)
            pl.BlockSpec((Hp, Op), lambda i: (0, 0)),            # w2^T (resident)
            pl.BlockSpec((1, Op), lambda i: (0, 0)),             # b2   (resident)
        ],
        out_specs=pl.BlockSpec((TB, Op), lambda i: (i, 0)),      # lane-dense output
        compiler_params=pltpu.CompilerParams(
            dimension_semantics=("parallel",)),                  # v7x: 2 TCs split batch
    )(prepped["a"], x, prepped["w1_t"], prepped["b1"],
      prepped["w2_t"], prepped["b2"])

    return out[:B, :O]


def init_params(key, input_size, hidden_size, output_size):
    """Deterministic synthetic init mirroring the PyTorch module's shapes."""
    k1, k2, k3, k4 = jax.random.split(key, 4)
    bound1 = 1.0 / (input_size ** 0.5)
    bound2 = 1.0 / (hidden_size ** 0.5)
    return {
        # nn.Linear(input_size, hidden_size): weight [H, I], bias [H]
        "w1": jax.random.uniform(k1, (hidden_size, input_size), jnp.float32,
                                 -bound1, bound1),
        "b1": jax.random.uniform(k2, (hidden_size,), jnp.float32, -bound1, bound1),
        # nn.PReLU(): single parameter, init 0.25
        "a": jnp.array([0.25], dtype=jnp.float32),
        # nn.Linear(hidden_size, output_size): weight [O, H], bias [O]
        "w2": jax.random.uniform(k3, (output_size, hidden_size), jnp.float32,
                                 -bound2, bound2),
        "b2": jax.random.uniform(k4, (output_size,), jnp.float32, -bound2, bound2),
    }


def reference_forward(features, params):
    h = features @ params["w1"].T + params["b1"]
    h = jnp.where(h >= 0.0, h, params["a"][0] * h)
    return h @ params["w2"].T + params["b2"]


if __name__ == "__main__":
    key = jax.random.PRNGKey(0)
    kx, kp = jax.random.split(key)

    batch, input_size, hidden_size, output_size = 8, 32, 64, 16
    features = jax.random.normal(kx, (batch, input_size), dtype=jnp.float32)
    params = init_params(kp, input_size, hidden_size, output_size)

    prepped = prepare_params(params)          # one-time weight prep (not per-call)
    out = policy_network_forward(features, prepped)
    out = jax.block_until_ready(out)

    ref = reference_forward(features, params)
    assert out.shape == (batch, output_size)
    assert jnp.allclose(out, ref, atol=1e-5, rtol=1e-5)

    print("KERNEL_OK")
</pallas_src>

<mosaic_0001>
module attributes {stable_mosaic.version = 11 : i64} {
  func.func @policy_network_kernel(%arg0: i32, %arg1: memref<1xf32, #tpu.memory_space<smem>>, %arg2: memref<8x32xf32, #tpu.memory_space<vmem>>, %arg3: memref<32x128xf32, #tpu.memory_space<vmem>>, %arg4: memref<1x128xf32, #tpu.memory_space<vmem>>, %arg5: memref<128x128xf32, #tpu.memory_space<vmem>>, %arg6: memref<1x128xf32, #tpu.memory_space<vmem>>, %arg7: memref<8x128xf32, #tpu.memory_space<vmem>>) attributes {dimension_semantics = [#tpu.dimension_semantics<parallel>], iteration_bounds = array<i64: 1>, scalar_prefetch = 0 : i64, scratch_operands = 0 : i64, tpu.core_type = #tpu.core_type<tc>, window_params = [{transform_indices = @transform_0, window_bounds = array<i64: 1>}, {transform_indices = @transform_1, window_bounds = array<i64: 8, 32>}, {pipeline_mode = #tpu.pipeline_mode<synchronous>, transform_indices = @transform_2, window_bounds = array<i64: 32, 128>}, {pipeline_mode = #tpu.pipeline_mode<synchronous>, transform_indices = @transform_3, window_bounds = array<i64: 1, 128>}, {pipeline_mode = #tpu.pipeline_mode<synchronous>, transform_indices = @transform_4, window_bounds = array<i64: 128, 128>}, {pipeline_mode = #tpu.pipeline_mode<synchronous>, transform_indices = @transform_5, window_bounds = array<i64: 1, 128>}, {transform_indices = @transform_6, window_bounds = array<i64: 8, 128>}]} {
    %c0 = arith.constant 0 : index
    %c0_0 = arith.constant 0 : index
    %0 = vector.load %arg2[%c0, %c0_0] : memref<8x32xf32, #tpu.memory_space<vmem>>, vector<8x32xf32>
    %c0_1 = arith.constant 0 : index
    %c0_2 = arith.constant 0 : index
    %1 = vector.load %arg3[%c0_1, %c0_2] : memref<32x128xf32, #tpu.memory_space<vmem>>, vector<32x128xf32>
    %cst = arith.constant dense<0.000000e+00> : vector<8x128xf32>
    %2 = tpu.matmul %0, %1, %cst {dimension_numbers = #tpu.dot_dimension_numbers<[1], [0], [0], [1], [0, 0, 1, 1], [], []>} : vector<8x32xf32>, vector<32x128xf32>, vector<8x128xf32> -> vector<8x128xf32>
    %c0_3 = arith.constant 0 : index
    %c0_4 = arith.constant 0 : index
    %3 = vector.load %arg4[%c0_3, %c0_4] : memref<1x128xf32, #tpu.memory_space<vmem>>, vector<1x128xf32>
    %4 = vector.broadcast %3 : vector<1x128xf32> to vector<8x128xf32>
    %5 = arith.addf %2, %4 : vector<8x128xf32>
    %c0_5 = arith.constant 0 : index
    %6 = memref.load %arg1[%c0_5] : memref<1xf32, #tpu.memory_space<smem>>
    %cst_6 = arith.constant 0.000000e+00 : f32
    %7 = vector.broadcast %cst_6 : f32 to vector<8x128xf32>
    %8 = arith.maximumf %5, %7 : vector<8x128xf32>
    %cst_7 = arith.constant 0.000000e+00 : f32
    %9 = vector.broadcast %cst_7 : f32 to vector<8x128xf32>
    %10 = arith.minimumf %5, %9 : vector<8x128xf32>
    %11 = vector.broadcast %6 : f32 to vector<8x128xf32>
    %12 = arith.mulf %11, %10 : vector<8x128xf32>
    %13 = arith.addf %8, %12 : vector<8x128xf32>
    %c0_8 = arith.constant 0 : index
    %c0_9 = arith.constant 0 : index
    %14 = vector.load %arg5[%c0_8, %c0_9] : memref<128x128xf32, #tpu.memory_space<vmem>>, vector<128x128xf32>
    %cst_10 = arith.constant dense<0.000000e+00> : vector<8x128xf32>
    %15 = tpu.matmul %13, %14, %cst_10 {dimension_numbers = #tpu.dot_dimension_numbers<[1], [0], [0], [1], [0, 0, 1, 1], [], []>} : vector<8x128xf32>, vector<128x128xf32>, vector<8x128xf32> -> vector<8x128xf32>
    %c0_11 = arith.constant 0 : index
    %c0_12 = arith.constant 0 : index
    %16 = vector.load %arg6[%c0_11, %c0_12] : memref<1x128xf32, #tpu.memory_space<vmem>>, vector<1x128xf32>
    %17 = vector.broadcast %16 : vector<1x128xf32> to vector<8x128xf32>
    %18 = arith.addf %15, %17 : vector<8x128xf32>
    %c0_13 = arith.constant 0 : index
    %c0_14 = arith.constant 0 : index
    %19 = vector.load %arg7[%c0_13, %c0_14] : memref<8x128xf32, #tpu.memory_space<vmem>>, vector<8x128xf32>
    tpu.vector_store %arg7[%c0_13, %c0_14], %18 {strides = array<i32>} : memref<8x128xf32, #tpu.memory_space<vmem>>, vector<8x128xf32>,
    return
  }
  func.func @transform_0(%arg0: i32) -> i32 {
    %c0_i32 = arith.constant 0 : i32
    %c0_i32_0 = arith.constant 0 : i32
    return %c0_i32 : i32
  }
  func.func @transform_1(%arg0: i32) -> (i32, i32) {
    %c0_i32 = arith.constant 0 : i32
    %c0_i32_0 = arith.constant 0 : i32
    return %arg0, %c0_i32 : i32, i32
  }
  func.func @transform_2(%arg0: i32) -> (i32, i32) {
    %c0_i32 = arith.constant 0 : i32
    %c0_i32_0 = arith.constant 0 : i32
    %c0_i32_1 = arith.constant 0 : i32
    return %c0_i32, %c0_i32_0 : i32, i32
  }
  func.func @transform_3(%arg0: i32) -> (i32, i32) {
    %c0_i32 = arith.constant 0 : i32
    %c0_i32_0 = arith.constant 0 : i32
    %c0_i32_1 = arith.constant 0 : i32
    return %c0_i32, %c0_i32_0 : i32, i32
  }
  func.func @transform_4(%arg0: i32) -> (i32, i32) {
    %c0_i32 = arith.constant 0 : i32
    %c0_i32_0 = arith.constant 0 : i32
    %c0_i32_1 = arith.constant 0 : i32
    return %c0_i32, %c0_i32_0 : i32, i32
  }
  func.func @transform_5(%arg0: i32) -> (i32, i32) {
    %c0_i32 = arith.constant 0 : i32
    %c0_i32_0 = arith.constant 0 : i32
    %c0_i32_1 = arith.constant 0 : i32
    return %c0_i32, %c0_i32_0 : i32, i32
  }
  func.func @transform_6(%arg0: i32) -> (i32, i32) {
    %c0_i32 = arith.constant 0 : i32
    %c0_i32_0 = arith.constant 0 : i32
    return %arg0, %c0_i32 : i32, i32
  }
}

</mosaic_0001>

<llo_original>
// kernel: tpu_custom_call.1
$region0: #{tpu_custom_call.1}
  #allocation0 [shape = 'u32[]', space=smem, size = 0x4, offset = 0x4, fixed_abs, tag = 'smem constant byte address 0x4 - core index']
  #allocation1 [shape = 'u32[144,128]{1,0:T(1,128)}', space=vmem, size = 0x12000, scoped, tag = 'internal scratch']
  #allocation2 [shape = 'f32[1]{0:T(128)S(6)}', space=smem, size = 0x200, scoped, tag = 'scoped memory for tpu_custom_call.1']
  %s0 = inlined_call_operand.<no memory space> [shape: f32[1], index: 0, kind: input, shape index: {}]
  %s1 = inlined_call_operand.hbm [shape: f32[8,32], index: 1, kind: input, shape index: {}]
  %s2 = inlined_call_operand.hbm [shape: f32[32,128], index: 2, kind: input, shape index: {}]
  %s3 = inlined_call_operand.vmem [shape: f32[1,128], index: 3, kind: input, shape index: {}]
  %s4 = inlined_call_operand.hbm [shape: f32[128,128], index: 4, kind: input, shape index: {}]
  %s5 = inlined_call_operand.vmem [shape: f32[1,128], index: 5, kind: input, shape index: {}]
  %s6 = inlined_call_operand.hbm [shape: f32[8,128], index: 6, kind: output, shape index: {}]
  %s7 = sld [smem:[#allocation0]]
  $region46: #{tpu_custom_call.1} parent=0
    _
  %s9 = ssub.s32 1, %s7
  %s10 = scalar_select 0, %s9, %s7
  %11 = sst [smem:[#allocation2]] %s0
  $region1: #{tpu_custom_call.1} parent=0
    #allocation3 [shape = 'u8[4096]{0}', space=vmem, size = 0x1000, scoped, tag = 'input window, operand 1, single buffered']
    #allocation4 [shape = 's32[1]{0}', space=sflag, size = 0x4, scoped, tag = 'scoped memory for tpu_custom_call.1']
    #allocation5 [shape = 's32[1]{0}', space=sflag, size = 0x4, scoped, tag = 'scoped memory for tpu_custom_call.1']
    #allocation6 [shape = 'u8[16384]{0}', space=vmem, size = 0x4000, scoped, tag = 'input window, operand 2, single buffered']
    #allocation7 [shape = 's32[1]{0}', space=sflag, size = 0x4, scoped, tag = 'scoped memory for tpu_custom_call.1']
    #allocation8 [shape = 'u8[65536]{0}', space=vmem, size = 0x10000, scoped, tag = 'input window, operand 4, single buffered']
    #allocation9 [shape = 'u8[4096]{0}', space=vmem, size = 0x1000, scoped, tag = 'output window, operand 0, single buffered']
    %12 = vsyncpa [#allocation4], 0
    %13 = vsyncpa [#allocation7], 0
    %14 = vsyncpa [#allocation5], 0
    // Predicated region
    $region2: #{tpu_custom_call.1} parent=1 // pred_check
      _
    $region3: #{tpu_custom_call.1} parent=1 // pred_check_branch
      %16 = sbr.rel (0) target = $region5
    $region4: #{tpu_custom_call.1} parent=1 // pred_region
      _
    $region5: #{tpu_custom_call.1} parent=1 // pred_fallthru
      _
    // Predicated region
    $region6: #{tpu_custom_call.1} parent=1 // pred_check
      _
    $region7: #{tpu_custom_call.1} parent=1 // pred_check_branch
      %18 = sbr.rel (0) target = $region9
    $region8: #{tpu_custom_call.1} parent=1 // pred_region
      %s20 = ssub.s32 128, 128
      %21 = vsyncadd [#allocation4], %s20
      %s23 = sshll.u32 [#allocation3], 4
      %s24 = int_to_ptr.vmem [resolvable:$true] %s23
      %26 = dma.hbm_to_vmem [thread:$0]  %s1, 128, %s24, [#allocation4]
    $region9: #{tpu_custom_call.1} parent=1 // pred_fallthru
      _
    // Predicated region
    $region10: #{tpu_custom_call.1} parent=1 // pred_check
      _
    $region11: #{tpu_custom_call.1} parent=1 // pred_check_branch
      %28 = sbr.rel (0) target = $region13
    $region12: #{tpu_custom_call.1} parent=1 // pred_region
      %s30 = ssub.s32 512, 512
      %31 = vsyncadd [#allocation7], %s30
      %s32 = sshll.u32 [#allocation6], 4
      %s33 = int_to_ptr.vmem [resolvable:$true] %s32
      %38 = dma.hbm_to_vmem [thread:$0]  %s2, 512, %s33, [#allocation7], 128, 128, 8
    $region13: #{tpu_custom_call.1} parent=1 // pred_fallthru
      _
    // Predicated region
    $region14: #{tpu_custom_call.1} parent=1 // pred_check
      _
    $region15: #{tpu_custom_call.1} parent=1 // pred_check_branch
      %40 = sbr.rel (0) target = $region17
    $region16: #{tpu_custom_call.1} parent=1 // pred_region
      _
    $region17: #{tpu_custom_call.1} parent=1 // pred_fallthru
      _
    // Predicated region
    $region18: #{tpu_custom_call.1} parent=1 // pred_check
      _
    $region19: #{tpu_custom_call.1} parent=1 // pred_check_branch
      %42 = sbr.rel (0) target = $region21
    $region20: #{tpu_custom_call.1} parent=1 // pred_region
      %s44 = ssub.s32 2048, 2048
      %45 = vsyncadd [#allocation7], %s44
      %s46 = sshll.u32 [#allocation8], 4
      %s47 = int_to_ptr.vmem [resolvable:$true] %s46
      %52 = dma.hbm_to_vmem [thread:$0]  %s4, 2048, %s47, [#allocation7], 128, 128, 8
    $region21: #{tpu_custom_call.1} parent=1 // pred_fallthru
      _
    // Predicated region
    $region22: #{tpu_custom_call.1} parent=1 // pred_check
      _
    $region23: #{tpu_custom_call.1} parent=1 // pred_check_branch
      %54 = sbr.rel (0) target = $region25
    $region24: #{tpu_custom_call.1} parent=1 // pred_region
      _
    $region25: #{tpu_custom_call.1} parent=1 // pred_fallthru
      _
    // Predicated region
    $region26: #{tpu_custom_call.1} parent=1 // pred_check
      _
    $region27: #{tpu_custom_call.1} parent=1 // pred_check_branch
      %56 = sbr.rel (0) target = $region29
    $region28: #{tpu_custom_call.1} parent=1 // pred_region
      %57 = dma.done [#allocation4], 128
    $region29: #{tpu_custom_call.1} parent=1 // pred_fallthru
      _
    // Predicated region
    $region30: #{tpu_custom_call.1} parent=1 // pred_check
      _
    $region31: #{tpu_custom_call.1} parent=1 // pred_check_branch
      %59 = sbr.rel (0) target = $region33
    $region32: #{tpu_custom_call.1} parent=1 // pred_region
      %60 = dma.done [#allocation7], 512
    $region33: #{tpu_custom_call.1} parent=1 // pred_fallthru
      _
    // Predicated region
    $region34: #{tpu_custom_call.1} parent=1 // pred_check
      _
    $region35: #{tpu_custom_call.1} parent=1 // pred_check_branch
      %62 = sbr.rel (0) target = $region37
    $region36: #{tpu_custom_call.1} parent=1 // pred_region
      %63 = dma.done [#allocation7], 2048
    $region37: #{tpu_custom_call.1} parent=1 // pred_fallthru
      _
    %v64 = vld [vmem:[#allocation3] sm:$0xff]
    %v65 = vld [vmem:[#allocation6] sm:$0xff]
    %v66 = vld [vmem:[#allocation6 + $0x8] sm:$0xff]
    %v67 = vld [vmem:[#allocation6 + $0x10] sm:$0xff]
    %v68 = vld [vmem:[#allocation6 + $0x18] sm:$0xff]
    %v69 = vld [vmem:[%s3] sm:$0x1]
    %v71 = vlaneseq
    %v72 = vshrl.u32 %v71, 7
    %v73 = vsub.s32 0, %v72
    %v74 = vrot.slane %v69, %v73
    %vm76 = vcmask 261120
    %v78 = vsel %vm76, %v64, 0
    %80 = vmatprep.subr.mxu0 0.0
    %81 = vmatpush1.msra.mxu0 %v65
    %82 = vmatprep.subr.mxu0 0.0
    %83 = vmatpush1.msra.mxu0 %v66
    %84 = vmatprep.subr.mxu0 0.0
    %85 = vmatpush1.msra.mxu0 %v67
    %86 = vmatprep.subr.mxu0 0.0
    %87 = vmatpush1.msra.mxu0 %v68
    %88 = vmatprep.subr.mxu0 0.0
    %89 = vmatpush1.msra.mxu0 0.0
    %90 = vmatprep.subr.mxu0 0.0
    %91 = vmatpush1.msra.mxu0 0.0
    %92 = vmatprep.subr.mxu0 0.0
    %93 = vmatpush1.msra.mxu0 0.0
    %94 = vmatprep.subr.mxu0 0.0
    %95 = vmatpush1.msra.mxu0 0.0
    %96 = vmatprep.subr.mxu0 0.0
    %97 = vmatpush1.msra.mxu0 0.0
    %98 = vmatprep.subr.mxu0 0.0
    %99 = vmatpush1.msra.mxu0 0.0
    %100 = vmatprep.subr.mxu0 0.0
    %101 = vmatpush1.msra.mxu0 0.0
    %102 = vmatprep.subr.mxu0 0.0
    %103 = vmatpush1.msra.mxu0 0.0
    %104 = vmatprep.subr.mxu0 0.0
    %105 = vmatpush1.msra.mxu0 0.0
    %106 = vmatprep.subr.mxu0 0.0
    %107 = vmatpush1.msra.mxu0 0.0
    %108 = vmatprep.subr.mxu0 0.0
    %109 = vmatpush1.msra.mxu0 0.0
    %110 = vmatprep.subr.mxu0 0.0
    %111 = vmatpush1.msra.mxu0 0.0
    %112 = vmatprep.subr.mxu0 0.0
    %113 = vmatpush1.msra.mxu0 0.0
    %114 = vmatprep.subr.mxu0 0.0
    %115 = vmatpush1.msra.mxu0 0.0
    %116 = vmatprep.subr.mxu0 0.0
    %117 = vmatpush1.msra.mxu0 0.0
    %118 = vmatprep.subr.mxu0 0.0
    %119 = vmatpush1.msra.mxu0 0.0
    %120 = vmatprep.subr.mxu0 0.0
    %121 = vmatpush1.msra.mxu0 0.0
    %122 = vmatprep.subr.mxu0 0.0
    %123 = vmatpush1.msra.mxu0 0.0
    %124 = vmatprep.subr.mxu0 0.0
    %125 = vmatpush1.msra.mxu0 0.0
    %126 = vmatprep.subr.mxu0 0.0
    %127 = vmatpush1.msra.mxu0 0.0
    %128 = vmatprep.subr.mxu0 0.0
    %129 = vmatpush1.msra.mxu0 0.0
    %130 = vmatprep.subr.mxu0 0.0
    %131 = vmatpush1.msra.mxu0 0.0
    %132 = vmatprep.subr.mxu0 0.0
    %133 = vmatpush1.msra.mxu0 0.0
    %134 = vmatprep.subr.mxu0 0.0
    %135 = vmatpush1.msra.mxu0 0.0
    %136 = vmatprep.subr.mxu0 0.0
    %137 = vmatpush1.msra.mxu0 0.0
    %138 = vmatprep.subr.mxu0 0.0
    %139 = vmatpush1.msra.mxu0 0.0
    %140 = vmatprep.subr.mxu0 0.0
    %141 = vmatpush1.msra.mxu0 0.0
    %142 = vmatprep.subr.mxu0 0.0
    %143 = vmatpush1.msra.mxu0 0.0
    %144 = vmatprep.mubr.f32.mxu0 0.0
    %145 = vmatmul.mubr.f32.gmra.mrb[0].mxu0 %v78
    %v146 = vpop.f32.mrb[0].mxu0
    %v147 = vadd.f32 %v74, %v146
    %v148 = vpop.f32.mrb[0].mxu0
    %149 = vdwg.mxu0
    %s150 = sld [smem:[#allocation2]]
    %v151 = vmax.f32 %v147, 0.0
    %v152 = vmin.f32 %v147, 0.0
    %v153 = vstv %s150
    %v154 = vmul.f32 %v153, %v152
    %v155 = vadd.f32 %v151, %v154
    %v156 = vld [vmem:[#allocation8] sm:$0xff]
    %v157 = vld [vmem:[#allocation8 + $0x8] sm:$0xff]
    %v158 = vld [vmem:[#allocation8 + $0x10] sm:$0xff]
    %v159 = vld [vmem:[#allocation8 + $0x18] sm:$0xff]
    %v160 = vld [vmem:[#allocation8 + $0x20] sm:$0xff]
    %v161 = vld [vmem:[#allocation8 + $0x28] sm:$0xff]
    %v162 = vld [vmem:[#allocation8 + $0x30] sm:$0xff]
    %v163 = vld [vmem:[#allocation8 + $0x38] sm:$0xff]
    %v164 = vld [vmem:[#allocation8 + $0x40] sm:$0xff]
    %v165 = vld [vmem:[#allocation8 + $0x48] sm:$0xff]
    %v166 = vld [vmem:[#allocation8 + $0x50] sm:$0xff]
    %v167 = vld [vmem:[#allocation8 + $0x58] sm:$0xff]
    %v168 = vld [vmem:[#allocation8 + $0x60] sm:$0xff]
    %v169 = vld [vmem:[#allocation8 + $0x68] sm:$0xff]
    %v170 = vld [vmem:[#allocation8 + $0x70] sm:$0xff]
    %v171 = vld [vmem:[#allocation8 + $0x78] sm:$0xff]
    %v172 = vld [vmem:[%s5] sm:$0x1]
    %v174 = vlaneseq
    %v175 = vshrl.u32 %v174, 7
    %v176 = vsub.s32 0, %v175
    %v177 = vrot.slane %v172, %v176
    %179 = vmatprep.subr.mxu0 0.0
    %180 = vmatpush1.msra.mxu0 %v156
    %181 = vmatprep.subr.mxu0 0.0
    %182 = vmatpush1.msra.mxu0 %v157
    %183 = vmatprep.subr.mxu0 0.0
    %184 = vmatpush1.msra.mxu0 %v158
    %185 = vmatprep.subr.mxu0 0.0
    %186 = vmatpush1.msra.mxu0 %v159
    %187 = vmatprep.subr.mxu0 0.0
    %188 = vmatpush1.msra.mxu0 %v160
    %189 = vmatprep.subr.mxu0 0.0
    %190 = vmatpush1.msra.mxu0 %v161
    %191 = vmatprep.subr.mxu0 0.0
    %192 = vmatpush1.msra.mxu0 %v162
    %193 = vmatprep.subr.mxu0 0.0
    %194 = vmatpush1.msra.mxu0 %v163
    %195 = vmatprep.subr.mxu0 0.0
    %196 = vmatpush1.msra.mxu0 %v164
    %197 = vmatprep.subr.mxu0 0.0
    %198 = vmatpush1.msra.mxu0 %v165
    %199 = vmatprep.subr.mxu0 0.0
    %200 = vmatpush1.msra.mxu0 %v166
    %201 = vmatprep.subr.mxu0 0.0
    %202 = vmatpush1.msra.mxu0 %v167
    %203 = vmatprep.subr.mxu0 0.0
    %204 = vmatpush1.msra.mxu0 %v168
    %205 = vmatprep.subr.mxu0 0.0
    %206 = vmatpush1.msra.mxu0 %v169
    %207 = vmatprep.subr.mxu0 0.0
    %208 = vmatpush1.msra.mxu0 %v170
    %209 = vmatprep.subr.mxu0 0.0
    %210 = vmatpush1.msra.mxu0 %v171
    %211 = vmatprep.subr.mxu0 0.0
    %212 = vmatpush1.msra.mxu0 0.0
    %213 = vmatprep.subr.mxu0 0.0
    %214 = vmatpush1.msra.mxu0 0.0
    %215 = vmatprep.subr.mxu0 0.0
    %216 = vmatpush1.msra.mxu0 0.0
    %217 = vmatprep.subr.mxu0 0.0
    %218 = vmatpush1.msra.mxu0 0.0
    %219 = vmatprep.subr.mxu0 0.0
    %220 = vmatpush1.msra.mxu0 0.0
    %221 = vmatprep.subr.mxu0 0.0
    %222 = vmatpush1.msra.mxu0 0.0
    %223 = vmatprep.subr.mxu0 0.0
    %224 = vmatpush1.msra.mxu0 0.0
    %225 = vmatprep.subr.mxu0 0.0
    %226 = vmatpush1.msra.mxu0 0.0
    %227 = vmatprep.subr.mxu0 0.0
    %228 = vmatpush1.msra.mxu0 0.0
    %229 = vmatprep.subr.mxu0 0.0
    %230 = vmatpush1.msra.mxu0 0.0
    %231 = vmatprep.subr.mxu0 0.0
    %232 = vmatpush1.msra.mxu0 0.0
    %233 = vmatprep.subr.mxu0 0.0
    %234 = vmatpush1.msra.mxu0 0.0
    %235 = vmatprep.subr.mxu0 0.0
    %236 = vmatpush1.msra.mxu0 0.0
    %237 = vmatprep.subr.mxu0 0.0
    %238 = vmatpush1.msra.mxu0 0.0
    %239 = vmatprep.subr.mxu0 0.0
    %240 = vmatpush1.msra.mxu0 0.0
    %241 = vmatprep.subr.mxu0 0.0
    %242 = vmatpush1.msra.mxu0 0.0
    %243 = vmatprep.mubr.f32.mxu0 0.0
    %244 = vmatmul.mubr.f32.gmra.mrb[0].mxu0 %v155
    %v245 = vpop.f32.mrb[0].mxu0
    %v246 = vadd.f32 %v177, %v245
    %v247 = vpop.f32.mrb[0].mxu0
    %248 = vdwg.mxu0
    %249 = vst [vmem:[#allocation9] sm:$0xff] %v246
    // Predicated region
    $region38: #{tpu_custom_call.1} parent=1 // pred_check
      _
    $region39: #{tpu_custom_call.1} parent=1 // pred_check_branch
      %251 = sbr.rel (0) target = $region41
    $region40: #{tpu_custom_call.1} parent=1 // pred_region
      %s253 = ssub.s32 128, 128
      %254 = vsyncadd [#allocation5], %s253
      %s256 = sshll.u32 [#allocation9], 4
      %s257 = int_to_ptr.vmem [resolvable:$true] %s256
      %259 = dma.vmem_to_hbm [thread:$0]  %s257, 128, %s6, [#allocation5]
    $region41: #{tpu_custom_call.1} parent=1 // pred_fallthru
      _
    // Predicated region
    $region42: #{tpu_custom_call.1} parent=1 // pred_check
      _
    $region43: #{tpu_custom_call.1} parent=1 // pred_check_branch
      %261 = sbr.rel (0) target = $region45
    $region44: #{tpu_custom_call.1} parent=1 // pred_region
      %262 = dma.done [#allocation5], 128
    $region45: #{tpu_custom_call.1} parent=1 // pred_fallthru
      _
    %263 = vsyncpa [#allocation4], 1
    %264 = vsyncpa [#allocation7], 1
    %265 = vsyncpa [#allocation5], 1

</llo_original>
